<compile_context>
chip_gen: v6e
topology: v6e:2x2x1
jax: 0.10.0
libtpu: 0.0.40
codegen_flags: <defaults>
</compile_context>

<pallas_src>
import functools

import jax
import jax.numpy as jnp
from jax import lax
from jax.experimental import pallas as pl
from jax.experimental.pallas import tpu as pltpu


# ----------------------------------------------------------------------------- #
# Pallas kernel: BN batch images per grid step, channels-first (C, H*W).         #
# ----------------------------------------------------------------------------- #
def _dense_layer_kernel(
    H, W, c_hid, c_g,
    x_ref,                 # (BN, Cin, HW)  f32
    w1_ref, b1_ref,        # (Chid, Cin) [mm dtype], (Chid, 1) f32   (BN2+bias folded)
    w2_ref, b2_ref,        # (Cg, 9*Chid) [mm dtype], (Cg, 1) f32    (im2col weight)
    bn1s_ref, bn1b_ref,    # (Cin, 1) f32                            fused BN1
    mask_ref,              # (9, HW) f32                             precomputed borders
    out_ref,               # (BN, Cg + Cin, HW)
    taps_ref,              # VMEM scratch (9*Chid, HW) [mm dtype]
):
    HW = H * W
    BN = x_ref.shape[0]
    mm_dtype = w1_ref.dtype

    w1 = w1_ref[...]
    w2 = w2_ref[...]
    b1 = b1_ref[...]
    b2 = b2_ref[...]
    bn1s = bn1s_ref[...]
    bn1b = bn1b_ref[...]

    for b in range(BN):                                   # static, unrolled
        x = x_ref[b]                                      # (Cin, HW), lane-dense f32

        # ---- conv1: BN1 -> ReLU -> 1x1 conv (MXU matmul); BN2 folded into w1/b1 ---
        a = jnp.maximum(x * bn1s + bn1b, 0.0)
        h = jnp.dot(w1, a.astype(mm_dtype),
                    preferred_element_type=jnp.float32) + b1
        h = jnp.maximum(h, 0.0)                           # ReLU after folded BN2

        # ---- conv2: 3x3 conv (padding=1) as ONE im2col matmul ----------------------
        # Taps are lane-rolled copies of h, border-masked with precomputed masks,
        # written straight into the (9*Chid, HW) VMEM scratch.
        k = 0
        for dy in (-1, 0, 1):
            for dx in (-1, 0, 1):
                d = dy * W + dx                           # flat source offset
                if d == 0:
                    tap = h                               # center tap: mask is all-ones
                else:
                    tap = pltpu.roll(h, (-d) % HW, axis=1) * mask_ref[pl.ds(k, 1), :]
                taps_ref[pl.ds(k * c_hid, c_hid), :] = tap.astype(taps_ref.dtype)
                k += 1

        conv2 = jnp.dot(w2, taps_ref[...],
                        preferred_element_type=jnp.float32) + b2    # (Cg, HW)

        # ---- torch.cat((conv2_out, x_), dim=1) via two slice stores ----------------
        out_ref[b, :c_g, :] = conv2.astype(out_ref.dtype)
        out_ref[b, c_g:, :] = x.astype(out_ref.dtype)     # pass-through stays exact


# ----------------------------------------------------------------------------- #
# One-time parameter preparation (OUTSIDE the per-call jit path).                #
# ----------------------------------------------------------------------------- #
def prepare_params(params, H, W, mm_dtype=jnp.float32):
    """Constant folds done once:
       - BN2 scale/shift + conv1 bias folded into conv1 weight/bias,
       - 3x3 HWIO weight reshaped to im2col layout (Cg, 9*Chid),
       - 3x3 border masks precomputed as (9, H*W),
       - matmul weights optionally stored in bf16 for the MXU."""
    bn2s = params["bn2s"]                                  # (Chid, 1)
    w1f = params["w1"] * bn2s                              # row-scale
    b1f = params["b1"] * bn2s + params["bn2b"]

    c_hid = params["w1"].shape[0]
    c_g = params["w2"].shape[3]
    # (ky, kx, ci, co) -> (co, (ky, kx, ci)) matches the tap stacking order below.
    w2k = jnp.transpose(params["w2"], (3, 0, 1, 2)).reshape(c_g, 9 * c_hid)

    pos = jnp.arange(H * W, dtype=jnp.int32)
    row = pos // W
    col = pos % W
    masks = []
    for dy in (-1, 0, 1):
        for dx in (-1, 0, 1):
            valid = ((row + dy >= 0) & (row + dy < H) &
                     (col + dx >= 0) & (col + dx < W))
            masks.append(valid.astype(jnp.float32))
    masks = jnp.stack(masks, axis=0)                       # (9, H*W)

    return {
        "w1": w1f.astype(mm_dtype),
        "b1": b1f.astype(jnp.float32),
        "w2k": w2k.astype(mm_dtype),
        "b2": params["b2"].astype(jnp.float32),
        "bn1s": params["bn1s"],
        "bn1b": params["bn1b"],
        "masks": masks,
    }


def _pick_batch_block(n, c_in, c_out, hw):
    """Largest divisor of n that keeps >=2 grid steps (v7x megacore) and a bounded
    per-step activation footprint."""
    best = 1
    for bn in range(1, n + 1):
        if n % bn:
            continue
        if n >= 2 and n // bn < 2:
            continue
        if bn * (c_in + c_out) * hw * 4 > (4 << 20):       # ~4 MiB activation cap
            continue
        best = max(best, bn)
    return best


# ----------------------------------------------------------------------------- #
# Wrapper                                                                        #
# ----------------------------------------------------------------------------- #
@jax.jit
def dense_layer_forward(x_nchw, prepped):
    """x_nchw: (N, Cin, H, W) f32 -> (N, Cgrowth + Cin, H, W) f32."""
    N, c_in, H, W = x_nchw.shape
    HW = H * W
    c_hid = prepped["w1"].shape[0]
    c_g = prepped["w2k"].shape[0]
    c_out = c_g + c_in
    mm_dtype = prepped["w1"].dtype
    mm_itemsize = jnp.dtype(mm_dtype).itemsize

    bn = _pick_batch_block(N, c_in, c_out, HW)

    # Free reshape (no transpose): channels-first, HW on the 128-lane axis.
    x = x_nchw.reshape(N, c_in, HW)

    param_vals = [prepped["w1"], prepped["b1"], prepped["w2k"], prepped["b2"],
                  prepped["bn1s"], prepped["bn1b"], prepped["masks"]]

    def full_spec(arr):
        nd = arr.ndim
        return pl.BlockSpec(arr.shape, lambda b, _nd=nd: (0,) * _nd)

    in_specs = [pl.BlockSpec((bn, c_in, HW), lambda b: (b, 0, 0))]
    in_specs += [full_spec(v) for v in param_vals]

    # Explicit VMEM budget (v7x: 64 MiB physical / 32 MiB default scoped).
    est = (2 * bn * c_in * HW * 4                    # x block, double-buffered
           + 2 * bn * c_out * HW * 4                 # out block, double-buffered
           + 9 * c_hid * HW * mm_itemsize            # im2col scratch
           + 2 * sum(int(v.size) * v.dtype.itemsize for v in param_vals)
           + (4 << 20))                              # headroom for vregs/intermediates
    vmem_limit = int(min(max(2 * est, 16 << 20), 48 << 20))

    out = pl.pallas_call(
        functools.partial(_dense_layer_kernel, H, W, c_hid, c_g),
        out_shape=jax.ShapeDtypeStruct((N, c_out, HW), jnp.float32),
        grid_spec=pltpu.PrefetchScalarGridSpec(
            num_scalar_prefetch=0,
            grid=(N // bn,),
            in_specs=in_specs,
            out_specs=pl.BlockSpec((bn, c_out, HW), lambda b: (b, 0, 0)),
            scratch_shapes=[pltpu.VMEM((9 * c_hid, HW), mm_dtype)],
        ),
        compiler_params=pltpu.CompilerParams(
            dimension_semantics=("parallel",),       # distinct output block per step
            vmem_limit_bytes=vmem_limit),
    )(x, *param_vals)

    return out.reshape(N, c_out, H, W)               # free reshape back to NCHW


# ----------------------------------------------------------------------------- #
# Deterministic parameter construction (mirrors the PyTorch __init__).           #
# ----------------------------------------------------------------------------- #
def make_params(key, c_in, c_hid, c_growth):
    eps = 1e-5
    ks = jax.random.split(key, 2)

    def trunc(k, shape, std=0.01):
        return (std * jax.random.truncated_normal(k, -2.0, 2.0, shape)).astype(jnp.float32)

    p = {
        # 1x1 conv stored as (Cout, Cin); 3x3 conv stored canonically as HWIO.
        "w1": trunc(ks[0], (c_hid, c_in)),
        "b1": jnp.zeros((c_hid, 1), jnp.float32),
        "w2": trunc(ks[1], (3, 3, c_hid, c_growth)),
        "b2": jnp.zeros((c_growth, 1), jnp.float32),
    }
    # Inference-mode BN fused scale/shift; PyTorch init: gamma=1, beta=0, mean=0, var=1.
    for name, nch in (("bn1", c_in), ("bn2", c_hid)):
        gamma = jnp.ones((nch,), jnp.float32)
        beta = jnp.zeros((nch,), jnp.float32)
        mean = jnp.zeros((nch,), jnp.float32)
        var = jnp.ones((nch,), jnp.float32)
        scale = gamma / jnp.sqrt(var + eps)
        shift = beta - mean * scale
        p[name + "s"] = scale.reshape(nch, 1)
        p[name + "b"] = shift.reshape(nch, 1)
    return p


# ----------------------------------------------------------------------------- #
# Pure-JAX reference for correctness check                                       #
# ----------------------------------------------------------------------------- #
def ref_forward(x, p):
    def bn_relu(t, s, b):
        return jnp.maximum(t * s.reshape(1, -1, 1, 1) + b.reshape(1, -1, 1, 1), 0.0)

    h = bn_relu(x, p["bn1s"], p["bn1b"])
    h = jnp.einsum("oc,nchw->nohw", p["w1"], h,
                   precision=lax.Precision.HIGHEST) + p["b1"].reshape(1, -1, 1, 1)
    h = bn_relu(h, p["bn2s"], p["bn2b"])
    h = lax.conv_general_dilated(
        h, p["w2"], window_strides=(1, 1), padding="SAME",
        dimension_numbers=("NCHW", "HWIO", "NCHW"),
        precision=lax.Precision.HIGHEST) + p["b2"].reshape(1, -1, 1, 1)
    return jnp.concatenate([h, x], axis=1)


if __name__ == "__main__":
    # Note: Chid and Cg should be multiples of 8 (16 for bf16 taps) to keep the
    # sublane-sliced tap stores and the split output stores unpadded.
    N, C_IN, C_HID, C_GROWTH, H, W = 2, 8, 16, 8, 16, 16
    key = jax.random.PRNGKey(0)
    kx, kp = jax.random.split(key)
    x = jax.random.normal(kx, (N, C_IN, H, W), dtype=jnp.float32)
    params = make_params(kp, C_IN, C_HID, C_GROWTH)
    ref = jax.block_until_ready(ref_forward(x, params))

    # --- f32 matmul operands: tight check against the f32 reference --------------
    prepped_f32 = prepare_params(params, H, W, mm_dtype=jnp.float32)
    out = jax.block_until_ready(dense_layer_forward(x, prepped_f32))
    assert out.shape == (N, C_GROWTH + C_IN, H, W), out.shape
    assert bool(jnp.all(jnp.isfinite(out)))
    # The concatenated passthrough channels must be bit-exact copies of the input.
    assert bool(jnp.array_equal(out[:, C_GROWTH:], x))
    assert bool(jnp.allclose(out, ref, rtol=1e-3, atol=1e-6)), "f32 mismatch vs reference"

    # --- bf16 matmul operands (v5e/v6e/v7x MXU path): looser tolerance -----------
    prepped_bf16 = prepare_params(params, H, W, mm_dtype=jnp.bfloat16)
    out16 = jax.block_until_ready(dense_layer_forward(x, prepped_bf16))
    assert bool(jnp.all(jnp.isfinite(out16)))
    assert bool(jnp.array_equal(out16[:, C_GROWTH:], x))   # pass-through stays exact f32
    assert bool(jnp.allclose(out16, ref, rtol=5e-2, atol=1e-3)), "bf16 mismatch vs reference"

    print("KERNEL_OK")
</pallas_src>

<mosaic_0001>
module attributes {stable_mosaic.version = 11 : i64} {
  func.func @_dense_layer_kernel(%arg0: i32, %arg1: memref<1x8x256xf32, #tpu.memory_space<vmem>>, %arg2: memref<16x8xf32, #tpu.memory_space<vmem>>, %arg3: memref<16x1xf32, #tpu.memory_space<vmem>>, %arg4: memref<8x144xf32, #tpu.memory_space<vmem>>, %arg5: memref<8x1xf32, #tpu.memory_space<vmem>>, %arg6: memref<8x1xf32, #tpu.memory_space<vmem>>, %arg7: memref<8x1xf32, #tpu.memory_space<vmem>>, %arg8: memref<9x256xf32, #tpu.memory_space<vmem>>, %arg9: memref<1x16x256xf32, #tpu.memory_space<vmem>>, %arg10: memref<144x256xf32, #tpu.memory_space<vmem>>) attributes {dimension_semantics = [#tpu.dimension_semantics<parallel>], iteration_bounds = array<i64: 2>, scalar_prefetch = 0 : i64, scratch_operands = 1 : i64, tpu.core_type = #tpu.core_type<tc>, window_params = [{transform_indices = @transform_0, window_bounds = array<i64: 1, 8, 256>}, {pipeline_mode = #tpu.pipeline_mode<synchronous>, transform_indices = @transform_1, window_bounds = array<i64: 16, 8>}, {pipeline_mode = #tpu.pipeline_mode<synchronous>, transform_indices = @transform_2, window_bounds = array<i64: 16, 1>}, {pipeline_mode = #tpu.pipeline_mode<synchronous>, transform_indices = @transform_3, window_bounds = array<i64: 8, 144>}, {pipeline_mode = #tpu.pipeline_mode<synchronous>, transform_indices = @transform_4, window_bounds = array<i64: 8, 1>}, {pipeline_mode = #tpu.pipeline_mode<synchronous>, transform_indices = @transform_5, window_bounds = array<i64: 8, 1>}, {pipeline_mode = #tpu.pipeline_mode<synchronous>, transform_indices = @transform_6, window_bounds = array<i64: 8, 1>}, {pipeline_mode = #tpu.pipeline_mode<synchronous>, transform_indices = @transform_7, window_bounds = array<i64: 9, 256>}, {transform_indices = @transform_8, window_bounds = array<i64: 1, 16, 256>}]} {
    %c0 = arith.constant 0 : index
    %c0_0 = arith.constant 0 : index
    %0 = vector.load %arg2[%c0, %c0_0] : memref<16x8xf32, #tpu.memory_space<vmem>>, vector<16x8xf32>
    %c0_1 = arith.constant 0 : index
    %c0_2 = arith.constant 0 : index
    %1 = vector.load %arg4[%c0_1, %c0_2] : memref<8x144xf32, #tpu.memory_space<vmem>>, vector<8x144xf32>
    %c0_3 = arith.constant 0 : index
    %c0_4 = arith.constant 0 : index
    %2 = vector.load %arg3[%c0_3, %c0_4] : memref<16x1xf32, #tpu.memory_space<vmem>>, vector<16x1xf32>
    %c0_5 = arith.constant 0 : index
    %c0_6 = arith.constant 0 : index
    %3 = vector.load %arg5[%c0_5, %c0_6] : memref<8x1xf32, #tpu.memory_space<vmem>>, vector<8x1xf32>
    %c0_7 = arith.constant 0 : index
    %c0_8 = arith.constant 0 : index
    %4 = vector.load %arg6[%c0_7, %c0_8] : memref<8x1xf32, #tpu.memory_space<vmem>>, vector<8x1xf32>
    %c0_9 = arith.constant 0 : index
    %c0_10 = arith.constant 0 : index
    %5 = vector.load %arg7[%c0_9, %c0_10] : memref<8x1xf32, #tpu.memory_space<vmem>>, vector<8x1xf32>
    %c0_11 = arith.constant 0 : index
    %c0_12 = arith.constant 0 : index
    %c0_13 = arith.constant 0 : index
    %6 = vector.load %arg1[%c0_11, %c0_12, %c0_13] : memref<1x8x256xf32, #tpu.memory_space<vmem>>, vector<1x8x256xf32>
    %7 = vector.shape_cast %6 : vector<1x8x256xf32> to vector<8x256xf32>
    %8 = vector.broadcast %4 : vector<8x1xf32> to vector<8x256xf32>
    %9 = arith.mulf %7, %8 : vector<8x256xf32>
    %10 = vector.broadcast %5 : vector<8x1xf32> to vector<8x256xf32>
    %11 = arith.addf %9, %10 : vector<8x256xf32>
    %cst = arith.constant 0.000000e+00 : f32
    %12 = vector.broadcast %cst : f32 to vector<8x256xf32>
    %13 = arith.maximumf %11, %12 : vector<8x256xf32>
    %cst_14 = arith.constant dense<0.000000e+00> : vector<16x256xf32>
    %14 = tpu.matmul %0, %13, %cst_14 {dimension_numbers = #tpu.dot_dimension_numbers<[1], [0], [0], [1], [0, 0, 1, 1], [], []>} : vector<16x8xf32>, vector<8x256xf32>, vector<16x256xf32> -> vector<16x256xf32>
    %15 = vector.broadcast %2 : vector<16x1xf32> to vector<16x256xf32>
    %16 = arith.addf %14, %15 : vector<16x256xf32>
    %cst_15 = arith.constant 0.000000e+00 : f32
    %17 = vector.broadcast %cst_15 : f32 to vector<16x256xf32>
    %18 = arith.maximumf %16, %17 : vector<16x256xf32>
    %c17_i32 = arith.constant 17 : i32
    %19 = tpu.dynamic_rotate %18 by %c17_i32 dim 1 : vector<16x256xf32>, i32 -> vector<16x256xf32>
    %c0_16 = arith.constant 0 : index
    %c0_17 = arith.constant 0 : index
    %20 = vector.load %arg8[%c0_16, %c0_17] : memref<9x256xf32, #tpu.memory_space<vmem>>, vector<1x256xf32>
    %21 = vector.broadcast %20 : vector<1x256xf32> to vector<16x256xf32>
    %22 = arith.mulf %19, %21 : vector<16x256xf32>
    %c0_18 = arith.constant 0 : index
    %c0_19 = arith.constant 0 : index
    %23 = vector.load %arg10[%c0_18, %c0_19] : memref<144x256xf32, #tpu.memory_space<vmem>>, vector<16x256xf32>
    tpu.vector_store %arg10[%c0_18, %c0_19], %22 {strides = array<i32>} : memref<144x256xf32, #tpu.memory_space<vmem>>, vector<16x256xf32>,
    %c16_i32 = arith.constant 16 : i32
    %24 = tpu.dynamic_rotate %18 by %c16_i32 dim 1 : vector<16x256xf32>, i32 -> vector<16x256xf32>
    %c1 = arith.constant 1 : index
    %c0_20 = arith.constant 0 : index
    %25 = vector.load %arg8[%c1, %c0_20] : memref<9x256xf32, #tpu.memory_space<vmem>>, vector<1x256xf32>
    %26 = vector.broadcast %25 : vector<1x256xf32> to vector<16x256xf32>
    %27 = arith.mulf %24, %26 : vector<16x256xf32>
    %c16 = arith.constant 16 : index
    %c0_21 = arith.constant 0 : index
    %28 = vector.load %arg10[%c16, %c0_21] : memref<144x256xf32, #tpu.memory_space<vmem>>, vector<16x256xf32>
    tpu.vector_store %arg10[%c16, %c0_21], %27 {strides = array<i32>} : memref<144x256xf32, #tpu.memory_space<vmem>>, vector<16x256xf32>,
    %c15_i32 = arith.constant 15 : i32
    %29 = tpu.dynamic_rotate %18 by %c15_i32 dim 1 : vector<16x256xf32>, i32 -> vector<16x256xf32>
    %c2 = arith.constant 2 : index
    %c0_22 = arith.constant 0 : index
    %30 = vector.load %arg8[%c2, %c0_22] : memref<9x256xf32, #tpu.memory_space<vmem>>, vector<1x256xf32>
    %31 = vector.broadcast %30 : vector<1x256xf32> to vector<16x256xf32>
    %32 = arith.mulf %29, %31 : vector<16x256xf32>
    %c32 = arith.constant 32 : index
    %c0_23 = arith.constant 0 : index
    %33 = vector.load %arg10[%c32, %c0_23] : memref<144x256xf32, #tpu.memory_space<vmem>>, vector<16x256xf32>
    tpu.vector_store %arg10[%c32, %c0_23], %32 {strides = array<i32>} : memref<144x256xf32, #tpu.memory_space<vmem>>, vector<16x256xf32>,
    %c1_i32 = arith.constant 1 : i32
    %34 = tpu.dynamic_rotate %18 by %c1_i32 dim 1 : vector<16x256xf32>, i32 -> vector<16x256xf32>
    %c3 = arith.constant 3 : index
    %c0_24 = arith.constant 0 : index
    %35 = vector.load %arg8[%c3, %c0_24] : memref<9x256xf32, #tpu.memory_space<vmem>>, vector<1x256xf32>
    %36 = vector.broadcast %35 : vector<1x256xf32> to vector<16x256xf32>
    %37 = arith.mulf %34, %36 : vector<16x256xf32>
    %c48 = arith.constant 48 : index
    %c0_25 = arith.constant 0 : index
    %38 = vector.load %arg10[%c48, %c0_25] : memref<144x256xf32, #tpu.memory_space<vmem>>, vector<16x256xf32>
    tpu.vector_store %arg10[%c48, %c0_25], %37 {strides = array<i32>} : memref<144x256xf32, #tpu.memory_space<vmem>>, vector<16x256xf32>,
    %c64 = arith.constant 64 : index
    %c0_26 = arith.constant 0 : index
    %39 = vector.load %arg10[%c64, %c0_26] : memref<144x256xf32, #tpu.memory_space<vmem>>, vector<16x256xf32>
    tpu.vector_store %arg10[%c64, %c0_26], %18 {strides = array<i32>} : memref<144x256xf32, #tpu.memory_space<vmem>>, vector<16x256xf32>,
    %c255_i32 = arith.constant 255 : i32
    %40 = tpu.dynamic_rotate %18 by %c255_i32 dim 1 : vector<16x256xf32>, i32 -> vector<16x256xf32>
    %c5 = arith.constant 5 : index
    %c0_27 = arith.constant 0 : index
    %41 = vector.load %arg8[%c5, %c0_27] : memref<9x256xf32, #tpu.memory_space<vmem>>, vector<1x256xf32>
    %42 = vector.broadcast %41 : vector<1x256xf32> to vector<16x256xf32>
    %43 = arith.mulf %40, %42 : vector<16x256xf32>
    %c80 = arith.constant 80 : index
    %c0_28 = arith.constant 0 : index
    %44 = vector.load %arg10[%c80, %c0_28] : memref<144x256xf32, #tpu.memory_space<vmem>>, vector<16x256xf32>
    tpu.vector_store %arg10[%c80, %c0_28], %43 {strides = array<i32>} : memref<144x256xf32, #tpu.memory_space<vmem>>, vector<16x256xf32>,
    %c241_i32 = arith.constant 241 : i32
    %45 = tpu.dynamic_rotate %18 by %c241_i32 dim 1 : vector<16x256xf32>, i32 -> vector<16x256xf32>
    %c6 = arith.constant 6 : index
    %c0_29 = arith.constant 0 : index
    %46 = vector.load %arg8[%c6, %c0_29] : memref<9x256xf32, #tpu.memory_space<vmem>>, vector<1x256xf32>
    %47 = vector.broadcast %46 : vector<1x256xf32> to vector<16x256xf32>
    %48 = arith.mulf %45, %47 : vector<16x256xf32>
    %c96 = arith.constant 96 : index
    %c0_30 = arith.constant 0 : index
    %49 = vector.load %arg10[%c96, %c0_30] : memref<144x256xf32, #tpu.memory_space<vmem>>, vector<16x256xf32>
    tpu.vector_store %arg10[%c96, %c0_30], %48 {strides = array<i32>} : memref<144x256xf32, #tpu.memory_space<vmem>>, vector<16x256xf32>,
    %c240_i32 = arith.constant 240 : i32
    %50 = tpu.dynamic_rotate %18 by %c240_i32 dim 1 : vector<16x256xf32>, i32 -> vector<16x256xf32>
    %c7 = arith.constant 7 : index
    %c0_31 = arith.constant 0 : index
    %51 = vector.load %arg8[%c7, %c0_31] : memref<9x256xf32, #tpu.memory_space<vmem>>, vector<1x256xf32>
    %52 = vector.broadcast %51 : vector<1x256xf32> to vector<16x256xf32>
    %53 = arith.mulf %50, %52 : vector<16x256xf32>
    %c112 = arith.constant 112 : index
    %c0_32 = arith.constant 0 : index
    %54 = vector.load %arg10[%c112, %c0_32] : memref<144x256xf32, #tpu.memory_space<vmem>>, vector<16x256xf32>
    tpu.vector_store %arg10[%c112, %c0_32], %53 {strides = array<i32>} : memref<144x256xf32, #tpu.memory_space<vmem>>, vector<16x256xf32>,
    %c239_i32 = arith.constant 239 : i32
    %55 = tpu.dynamic_rotate %18 by %c239_i32 dim 1 : vector<16x256xf32>, i32 -> vector<16x256xf32>
    %c8 = arith.constant 8 : index
    %c0_33 = arith.constant 0 : index
    %56 = vector.load %arg8[%c8, %c0_33] : memref<9x256xf32, #tpu.memory_space<vmem>>, vector<1x256xf32>
    %57 = vector.broadcast %56 : vector<1x256xf32> to vector<16x256xf32>
    %58 = arith.mulf %55, %57 : vector<16x256xf32>
    %c128 = arith.constant 128 : index
    %c0_34 = arith.constant 0 : index
    %59 = vector.load %arg10[%c128, %c0_34] : memref<144x256xf32, #tpu.memory_space<vmem>>, vector<16x256xf32>
    tpu.vector_store %arg10[%c128, %c0_34], %58 {strides = array<i32>} : memref<144x256xf32, #tpu.memory_space<vmem>>, vector<16x256xf32>,
    %c0_35 = arith.constant 0 : index
    %c0_36 = arith.constant 0 : index
    %60 = vector.load %arg10[%c0_35, %c0_36] : memref<144x256xf32, #tpu.memory_space<vmem>>, vector<144x256xf32>
    %cst_37 = arith.constant dense<0.000000e+00> : vector<8x256xf32>
    %61 = tpu.matmul %1, %60, %cst_37 {dimension_numbers = #tpu.dot_dimension_numbers<[1], [0], [0], [1], [0, 0, 1, 1], [], []>} : vector<8x144xf32>, vector<144x256xf32>, vector<8x256xf32> -> vector<8x256xf32>
    %62 = vector.broadcast %3 : vector<8x1xf32> to vector<8x256xf32>
    %63 = arith.addf %61, %62 : vector<8x256xf32>
    %c0_38 = arith.constant 0 : index
    %c0_39 = arith.constant 0 : index
    %c0_40 = arith.constant 0 : index
    %64 = vector.load %arg9[%c0_38, %c0_39, %c0_40] : memref<1x16x256xf32, #tpu.memory_space<vmem>>, vector<1x8x256xf32>
    %65 = vector.shape_cast %64 : vector<1x8x256xf32> to vector<8x256xf32>
    %66 = vector.shape_cast %63 : vector<8x256xf32> to vector<1x8x256xf32>
    tpu.vector_store %arg9[%c0_38, %c0_39, %c0_40], %66 {strides = array<i32>} : memref<1x16x256xf32, #tpu.memory_space<vmem>>, vector<1x8x256xf32>,
    %c0_41 = arith.constant 0 : index
    %c8_42 = arith.constant 8 : index
    %c0_43 = arith.constant 0 : index
    %67 = vector.load %arg9[%c0_41, %c8_42, %c0_43] : memref<1x16x256xf32, #tpu.memory_space<vmem>>, vector<1x8x256xf32>
    %68 = vector.shape_cast %67 : vector<1x8x256xf32> to vector<8x256xf32>
    %69 = vector.shape_cast %7 : vector<8x256xf32> to vector<1x8x256xf32>
    tpu.vector_store %arg9[%c0_41, %c8_42, %c0_43], %69 {strides = array<i32>} : memref<1x16x256xf32, #tpu.memory_space<vmem>>, vector<1x8x256xf32>,
    return
  }
  func.func @transform_0(%arg0: i32) -> (i32, i32, i32) {
    %c0_i32 = arith.constant 0 : i32
    %c0_i32_0 = arith.constant 0 : i32
    %c0_i32_1 = arith.constant 0 : i32
    return %arg0, %c0_i32, %c0_i32_0 : i32, i32, i32
  }
  func.func @transform_1(%arg0: i32) -> (i32, i32) {
    %c0_i32 = arith.constant 0 : i32
    %c0_i32_0 = arith.constant 0 : i32
    %c0_i32_1 = arith.constant 0 : i32
    return %c0_i32, %c0_i32_0 : i32, i32
  }
  func.func @transform_2(%arg0: i32) -> (i32, i32) {
    %c0_i32 = arith.constant 0 : i32
    %c0_i32_0 = arith.constant 0 : i32
    %c0_i32_1 = arith.constant 0 : i32
    return %c0_i32, %c0_i32_0 : i32, i32
  }
  func.func @transform_3(%arg0: i32) -> (i32, i32) {
    %c0_i32 = arith.constant 0 : i32
    %c0_i32_0 = arith.constant 0 : i32
    %c0_i32_1 = arith.constant 0 : i32
    return %c0_i32, %c0_i32_0 : i32, i32
  }
  func.func @transform_4(%arg0: i32) -> (i32, i32) {
    %c0_i32 = arith.constant 0 : i32
    %c0_i32_0 = arith.constant 0 : i32
    %c0_i32_1 = arith.constant 0 : i32
    return %c0_i32, %c0_i32_0 : i32, i32
  }
  func.func @transform_5(%arg0: i32) -> (i32, i32) {
    %c0_i32 = arith.constant 0 : i32
    %c0_i32_0 = arith.constant 0 : i32
    %c0_i32_1 = arith.constant 0 : i32
    return %c0_i32, %c0_i32_0 : i32, i32
  }
  func.func @transform_6(%arg0: i32) -> (i32, i32) {
    %c0_i32 = arith.constant 0 : i32
    %c0_i32_0 = arith.constant 0 : i32
    %c0_i32_1 = arith.constant 0 : i32
    return %c0_i32, %c0_i32_0 : i32, i32
  }
  func.func @transform_7(%arg0: i32) -> (i32, i32) {
    %c0_i32 = arith.constant 0 : i32
    %c0_i32_0 = arith.constant 0 : i32
    %c0_i32_1 = arith.constant 0 : i32
    return %c0_i32, %c0_i32_0 : i32, i32
  }
  func.func @transform_8(%arg0: i32) -> (i32, i32, i32) {
    %c0_i32 = arith.constant 0 : i32
    %c0_i32_0 = arith.constant 0 : i32
    %c0_i32_1 = arith.constant 0 : i32
    return %arg0, %c0_i32, %c0_i32_0 : i32, i32, i32
  }
}

</mosaic_0001>

<llo_original>
// kernel: dense_layer_forward.1
$region0: #{dense_layer_forward.1}
  #allocation0 [shape = 'u32[]', space=smem, size = 0x4, offset = 0x4, fixed_abs, tag = 'smem constant byte address 0x4 - core index']
  #allocation1 [shape = 'u32[144,128]{1,0:T(1,128)}', space=vmem, size = 0x12000, scoped, tag = 'internal scratch']
  #allocation2 [shape = 'f32[144,256]{1,0:T(8,128)}', space=vmem, size = 0x24000, scoped, tag = 'scratch operand']
  %s0 = inlined_call_operand.vmem [shape: f32[2,8,256], index: 0, kind: input, shape index: {}]
  %s1 = inlined_call_operand.vmem [shape: f32[16,8], index: 1, kind: input, shape index: {}]
  %s2 = inlined_call_operand.vmem [shape: f32[16,1], index: 2, kind: input, shape index: {}]
  %s3 = inlined_call_operand.vmem [shape: f32[8,144], index: 3, kind: input, shape index: {}]
  %s4 = inlined_call_operand.vmem [shape: f32[8,1], index: 4, kind: input, shape index: {}]
  %s5 = inlined_call_operand.vmem [shape: f32[8,1], index: 5, kind: input, shape index: {}]
  %s6 = inlined_call_operand.vmem [shape: f32[8,1], index: 6, kind: input, shape index: {}]
  %s7 = inlined_call_operand.vmem [shape: f32[9,256], index: 7, kind: input, shape index: {}]
  %s8 = inlined_call_operand.vmem [shape: f32[2,16,256], index: 8, kind: output, shape index: {}]
  %s9 = sld [smem:[#allocation0]]
  $region65: #{dense_layer_forward.1} parent=0
    _
  %s11 = ssub.s32 1, %s9
  %s12 = scalar_select 0, %s11, %s9
  loop: start=0, step=1, limit=4
  $region2: #{dense_layer_forward.1} parent=0 // loop_pre_header
    _
  $region3: #{dense_layer_forward.1} parent=0 // loop_header
    %s14 = sphi 0, %s18
    %p15 = scmp.ge.s32.totalorder %s14, 4
    %s24 = sphi 0, %s26
    %s27 = sphi 0, %s24
    %s28 = sphi 0, %s27
    %s44 = sphi 0, %s28
    %s48 = sphi 0, %s48
    %s50 = sphi 0, %s48
    %s51 = sphi 0, %s50
    %s65 = sphi 0, %s51
    %s69 = sphi 0, %s69
    %s71 = sphi 0, %s69
    %s72 = sphi 0, %s71
    %s86 = sphi 0, %s72
    %s90 = sphi 0, %s90
    %s92 = sphi 0, %s90
    %s93 = sphi 0, %s92
    %s107 = sphi 0, %s93
    %s111 = sphi 0, %s111
    %s113 = sphi 0, %s111
    %s114 = sphi 0, %s113
    %s128 = sphi 0, %s114
    %s132 = sphi 0, %s132
    %s134 = sphi 0, %s132
    %s135 = sphi 0, %s134
    %s149 = sphi 0, %s135
    %s153 = sphi 0, %s153
    %s155 = sphi 0, %s153
    %s156 = sphi 0, %s155
    %s170 = sphi 0, %s156
    %s174 = sphi 0, %s174
    %s176 = sphi 0, %s174
    %s177 = sphi 0, %s176
    %s191 = sphi 0, %s177
    %s197 = sphi 0, %s199
    %s200 = sphi 0, %s197
    %s201 = sphi 0, %s200
    %s217 = sphi 0, %s201
  $region4: #{dense_layer_forward.1} parent=0 // loop_header_branch
    %17 = sbr.rel (%p15) target = $region8
  $region5: #{dense_layer_forward.1} parent=0 // loop_body
    %s19 = ssub.s32 %s14, 1
    %s20 = ssub.s32 %s14, 2
    %s21 = sadd.s32 %s14, 1
    %s22 = ssub.s32 %s14, %s21
    %p23 = scmp.eq.s32.totalorder %s22, 0
    %s25 = sadd.s32 %s24, 1
    %s26 = scalar_select %p23, %s24, %s25
    %p29 = pneg %p23
    %p30 = scmp.eq.s32.totalorder %s14, 1
    %p31 = por %p29, %p30
    %p32 = scmp.ne.s32.totalorder %s24, %s27
    %p33 = scmp.eq.s32.totalorder %s14, 0
    %p34 = por %p32, %p33
    %p35 = scmp.ne.s32.totalorder %s24, %s27
    %p36 = scmp.eq.s32.totalorder %s19, 1
    %p37 = por %p35, %p36
    %p38 = scmp.ne.s32.totalorder %s27, %s28
    %p39 = scmp.eq.s32.totalorder %s19, 0
    %p40 = por %p38, %p39
    %p41 = scmp.ne.s32.totalorder %s27, %s28
    %p42 = scmp.eq.s32.totalorder %s20, 1
    %p43 = por %p41, %p42
    %p45 = scmp.ne.s32.totalorder %s28, %s44
    %p46 = scmp.eq.s32.totalorder %s20, 0
    %p47 = por %p45, %p46
    %s49 = sadd.s32 %s48, 1
    %p52 = scmp.eq.s32.totalorder %s14, 1
    %p53 = scmp.ne.s32.totalorder %s48, %s50
    %p54 = scmp.eq.s32.totalorder %s14, 0
    %p55 = por %p53, %p54
    %p56 = scmp.ne.s32.totalorder %s48, %s50
    %p57 = scmp.eq.s32.totalorder %s19, 1
    %p58 = por %p56, %p57
    %p59 = scmp.ne.s32.totalorder %s50, %s51
    %p60 = scmp.eq.s32.totalorder %s19, 0
    %p61 = por %p59, %p60
    %p62 = scmp.ne.s32.totalorder %s50, %s51
    %p63 = scmp.eq.s32.totalorder %s20, 1
    %p64 = por %p62, %p63
    %p66 = scmp.ne.s32.totalorder %s51, %s65
    %p67 = scmp.eq.s32.totalorder %s20, 0
    %p68 = por %p66, %p67
    %s70 = sadd.s32 %s69, 1
    %p73 = scmp.eq.s32.totalorder %s14, 1
    %p74 = scmp.ne.s32.totalorder %s69, %s71
    %p75 = scmp.eq.s32.totalorder %s14, 0
    %p76 = por %p74, %p75
    %p77 = scmp.ne.s32.totalorder %s69, %s71
    %p78 = scmp.eq.s32.totalorder %s19, 1
    %p79 = por %p77, %p78
    %p80 = scmp.ne.s32.totalorder %s71, %s72
    %p81 = scmp.eq.s32.totalorder %s19, 0
    %p82 = por %p80, %p81
    %p83 = scmp.ne.s32.totalorder %s71, %s72
    %p84 = scmp.eq.s32.totalorder %s20, 1
    %p85 = por %p83, %p84
    %p87 = scmp.ne.s32.totalorder %s72, %s86
    %p88 = scmp.eq.s32.totalorder %s20, 0
    %p89 = por %p87, %p88
    %s91 = sadd.s32 %s90, 1
    %p94 = scmp.eq.s32.totalorder %s14, 1
    %p95 = scmp.ne.s32.totalorder %s90, %s92
    %p96 = scmp.eq.s32.totalorder %s14, 0
    %p97 = por %p95, %p96
    %p98 = scmp.ne.s32.totalorder %s90, %s92
    %p99 = scmp.eq.s32.totalorder %s19, 1
    %p100 = por %p98, %p99
    %p101 = scmp.ne.s32.totalorder %s92, %s93
    %p102 = scmp.eq.s32.totalorder %s19, 0
    %p103 = por %p101, %p102
    %p104 = scmp.ne.s32.totalorder %s92, %s93
    %p105 = scmp.eq.s32.totalorder %s20, 1
    %p106 = por %p104, %p105
    %p108 = scmp.ne.s32.totalorder %s93, %s107
    %p109 = scmp.eq.s32.totalorder %s20, 0
    %p110 = por %p108, %p109
    %s112 = sadd.s32 %s111, 1
    %p115 = scmp.eq.s32.totalorder %s14, 1
    %p116 = scmp.ne.s32.totalorder %s111, %s113
    %p117 = scmp.eq.s32.totalorder %s14, 0
    %p118 = por %p116, %p117
    %p119 = scmp.ne.s32.totalorder %s111, %s113
    %p120 = scmp.eq.s32.totalorder %s19, 1
    %p121 = por %p119, %p120
    %p122 = scmp.ne.s32.totalorder %s113, %s114
    %p123 = scmp.eq.s32.totalorder %s19, 0
    %p124 = por %p122, %p123
    %p125 = scmp.ne.s32.totalorder %s113, %s114
    %p126 = scmp.eq.s32.totalorder %s20, 1
    %p127 = por %p125, %p126
    %p129 = scmp.ne.s32.totalorder %s114, %s128
    %p130 = scmp.eq.s32.totalorder %s20, 0
    %p131 = por %p129, %p130
    %s133 = sadd.s32 %s132, 1
    %p136 = scmp.eq.s32.totalorder %s14, 1
    %p137 = scmp.ne.s32.totalorder %s132, %s134
    %p138 = scmp.eq.s32.totalorder %s14, 0
    %p139 = por %p137, %p138
    %p140 = scmp.ne.s32.totalorder %s132, %s134
    %p141 = scmp.eq.s32.totalorder %s19, 1
    %p142 = por %p140, %p141
    %p143 = scmp.ne.s32.totalorder %s134, %s135
    %p144 = scmp.eq.s32.totalorder %s19, 0
    %p145 = por %p143, %p144
    %p146 = scmp.ne.s32.totalorder %s134, %s135
    %p147 = scmp.eq.s32.totalorder %s20, 1
    %p148 = por %p146, %p147
    %p150 = scmp.ne.s32.totalorder %s135, %s149
    %p151 = scmp.eq.s32.totalorder %s20, 0
    %p152 = por %p150, %p151
    %s154 = sadd.s32 %s153, 1
    %p157 = scmp.eq.s32.totalorder %s14, 1
    %p158 = scmp.ne.s32.totalorder %s153, %s155
    %p159 = scmp.eq.s32.totalorder %s14, 0
    %p160 = por %p158, %p159
    %p161 = scmp.ne.s32.totalorder %s153, %s155
    %p162 = scmp.eq.s32.totalorder %s19, 1
    %p163 = por %p161, %p162
    %p164 = scmp.ne.s32.totalorder %s155, %s156
    %p165 = scmp.eq.s32.totalorder %s19, 0
    %p166 = por %p164, %p165
    %p167 = scmp.ne.s32.totalorder %s155, %s156
    %p168 = scmp.eq.s32.totalorder %s20, 1
    %p169 = por %p167, %p168
    %p171 = scmp.ne.s32.totalorder %s156, %s170
    %p172 = scmp.eq.s32.totalorder %s20, 0
    %p173 = por %p171, %p172
    %s175 = sadd.s32 %s174, 1
    %p178 = scmp.eq.s32.totalorder %s14, 1
    %p179 = scmp.ne.s32.totalorder %s174, %s176
    %p180 = scmp.eq.s32.totalorder %s14, 0
    %p181 = por %p179, %p180
    %p182 = scmp.ne.s32.totalorder %s174, %s176
    %p183 = scmp.eq.s32.totalorder %s19, 1
    %p184 = por %p182, %p183
    %p185 = scmp.ne.s32.totalorder %s176, %s177
    %p186 = scmp.eq.s32.totalorder %s19, 0
    %p187 = por %p185, %p186
    %p188 = scmp.ne.s32.totalorder %s176, %s177
    %p189 = scmp.eq.s32.totalorder %s20, 1
    %p190 = por %p188, %p189
    %p192 = scmp.ne.s32.totalorder %s177, %s191
    %p193 = scmp.eq.s32.totalorder %s20, 0
    %p194 = por %p192, %p193
    %s195 = ssub.s32 %s14, %s21
    %p196 = scmp.eq.s32.totalorder %s195, 0
    %s198 = sadd.s32 %s197, 1
    %s199 = scalar_select %p196, %s197, %s198
    %p202 = pneg %p196
    %p203 = scmp.eq.s32.totalorder %s14, 1
    %p204 = por %p202, %p203
    %p205 = scmp.ne.s32.totalorder %s197, %s200
    %p206 = scmp.eq.s32.totalorder %s14, 0
    %p207 = por %p205, %p206
    %p208 = scmp.ne.s32.totalorder %s197, %s200
    %p209 = scmp.eq.s32.totalorder %s19, 1
    %p210 = por %p208, %p209
    %p211 = scmp.ne.s32.totalorder %s200, %s201
    %p212 = scmp.eq.s32.totalorder %s19, 0
    %p213 = por %p211, %p212
    %p214 = scmp.ne.s32.totalorder %s200, %s201
    %p215 = scmp.eq.s32.totalorder %s20, 1
    %p216 = por %p214, %p215
    %p218 = scmp.ne.s32.totalorder %s201, %s217
    %p219 = scmp.eq.s32.totalorder %s20, 0
    %p220 = por %p218, %p219
    %p221 = scmp.le.s32.totalorder 1, %s14
    %p222 = scmp.lt.s32.totalorder %s14, 3
    %p223 = pnand %p221, %p222
    %p224 = pneg %p223
    // Predicated region
    $region9: #{dense_layer_forward.1} parent=5 // pred_check
      _
    $region10: #{dense_layer_forward.1} parent=5 // pred_check_branch
      %226 = sbr.rel (%p223) target = $region12
    $region11: #{dense_layer_forward.1} parent=5 // pred_region
      %s227 = ssub.s32 %s14, 1
      // Predicated region
      $region13: #{dense_layer_forward.1} parent=11 // pred_check
        %p228 = pneg %p61
      $region14: #{dense_layer_forward.1} parent=11 // pred_check_branch
        %230 = sbr.rel (%p228) target = $region16
      $region15: #{dense_layer_forward.1} parent=11 // pred_region
        _
      $region16: #{dense_layer_forward.1} parent=11 // pred_fallthru
        _
      // Predicated region
      $region17: #{dense_layer_forward.1} parent=11 // pred_check
        %p231 = pneg %p82
      $region18: #{dense_layer_forward.1} parent=11 // pred_check_branch
        %233 = sbr.rel (%p231) target = $region20
      $region19: #{dense_layer_forward.1} parent=11 // pred_region
        _
      $region20: #{dense_layer_forward.1} parent=11 // pred_fallthru
        _
      // Predicated region
      $region21: #{dense_layer_forward.1} parent=11 // pred_check
        %p234 = pneg %p103
      $region22: #{dense_layer_forward.1} parent=11 // pred_check_branch
        %236 = sbr.rel (%p234) target = $region24
      $region23: #{dense_layer_forward.1} parent=11 // pred_region
        _
      $region24: #{dense_layer_forward.1} parent=11 // pred_fallthru
        _
      // Predicated region
      $region25: #{dense_layer_forward.1} parent=11 // pred_check
        %p237 = pneg %p124
      $region26: #{dense_layer_forward.1} parent=11 // pred_check_branch
        %239 = sbr.rel (%p237) target = $region28
      $region27: #{dense_layer_forward.1} parent=11 // pred_region
        _
      $region28: #{dense_layer_forward.1} parent=11 // pred_fallthru
        _
      // Predicated region
      $region29: #{dense_layer_forward.1} parent=11 // pred_check
        %p240 = pneg %p145
      $region30: #{dense_layer_forward.1} parent=11 // pred_check_branch
        %242 = sbr.rel (%p240) target = $region32
      $region31: #{dense_layer_forward.1} parent=11 // pred_region
        _
      $region32: #{dense_layer_forward.1} parent=11 // pred_fallthru
        _
      // Predicated region
      $region33: #{dense_layer_forward.1} parent=11 // pred_check
        %p243 = pneg %p166
      $region34: #{dense_layer_forward.1} parent=11 // pred_check_branch
        %245 = sbr.rel (%p243) target = $region36
      $region35: #{dense_layer_forward.1} parent=11 // pred_region
        _
      $region36: #{dense_layer_forward.1} parent=11 // pred_fallthru
        _
      // Predicated region
      $region37: #{dense_layer_forward.1} parent=11 // pred_check
        %p246 = pneg %p187
      $region38: #{dense_layer_forward.1} parent=11 // pred_check_branch
        %248 = sbr.rel (%p246) target = $region40
      $region39: #{dense_layer_forward.1} parent=11 // pred_region
        _
      $region40: #{dense_layer_forward.1} parent=11 // pred_fallthru
        _
    $region12: #{dense_layer_forward.1} parent=5 // pred_fallthru
      _
    %p249 = scmp.lt.s32.totalorder %s14, 2
    // Predicated region
    $region41: #{dense_layer_forward.1} parent=5 // pred_check
      %p250 = pneg %p249
    $region42: #{dense_layer_forward.1} parent=5 // pred_check_branch
      %252 = sbr.rel (%p250) target = $region44
    $region43: #{dense_layer_forward.1} parent=5 // pred_region
      // Predicated region
      $region45: #{dense_layer_forward.1} parent=43 // pred_check
        %p253 = pneg %p34
      $region46: #{dense_layer_forward.1} parent=43 // pred_check_branch
        %255 = sbr.rel (%p253) target = $region48
      $region47: #{dense_layer_forward.1} parent=43 // pred_region
        %p256 = scmp.lt.s32.totalorder %s14, 1
        %s257 = scalar_select %p256, %s14, 1
        %s258 = smul.addr %s257, 2
        %s259 = smul.addr %s258, 8
        %s260 = scalar_lea.vmem %s0, %s259
      $region48: #{dense_layer_forward.1} parent=43 // pred_fallthru
        _
    $region44: #{dense_layer_forward.1} parent=5 // pred_fallthru
      _
    %p261 = scmp.le.s32.totalorder 1, %s14
    %p262 = scmp.lt.s32.totalorder %s14, 3
    %p263 = pnand %p261, %p262
    %p264 = pneg %p263
    // Predicated region
    $region49: #{dense_layer_forward.1} parent=5 // pred_check
      _
    $region50: #{dense_layer_forward.1} parent=5 // pred_check_branch
      %266 = sbr.rel (%p263) target = $region52
    $region51: #{dense_layer_forward.1} parent=5 // pred_region
      %s267 = ssub.s32 %s14, 1
      %p268 = scmp.lt.s32.totalorder %s19, 1
      %s269 = scalar_select %p268, %s19, 1
      %s270 = smul.addr %s269, 2
      %s271 = smul.addr %s270, 8
      %s272 = scalar_lea.vmem %s0, %s271
      %p273 = pneg %p40
      %p274 = pneg %p37
      %p275 = pneg %p61
      %p276 = pneg %p58
      %p277 = pneg %p82
      %p278 = pneg %p79
      %p279 = pneg %p103
      %p280 = pneg %p100
      %p281 = pneg %p124
      %p282 = pneg %p121
      %p283 = pneg %p145
      %p284 = pneg %p142
      %p285 = pneg %p166
      %p286 = pneg %p163
      %p287 = pneg %p187
      %p288 = pneg %p184
      %p289 = pneg %p213
      %p290 = pneg %p210
      %p291 = scmp.lt.s32.totalorder %s19, 1
      %s292 = scalar_select %p291, %s19, 1
      %s293 = smul.addr %s292, 4
      %s294 = smul.addr %s293, 8
      %s295 = scalar_lea.vmem %s8, %s294
      %p296 = scmp.lt.s32.totalorder %s19, 1
      %s297 = scalar_select %p296, %s19, 1
      %s298 = smul.addr %s297, 2
      %s299 = smul.addr %s298, 8
      %s300 = scalar_lea.vmem %s0, %s299
      %p301 = scmp.lt.s32.totalorder %s19, 1
      %s302 = scalar_select %p301, %s19, 1
      %s303 = smul.addr %s302, 4
      %s304 = smul.addr %s303, 8
      %s305 = scalar_lea.vmem %s8, %s304
      %v306 = vld [vmem:[%s1] sm:$0xff]
      %v307 = vld [vmem:[%s1 + $0x8] sm:$0xff]
      %v308 = vld [vmem:[%s3] sm:$0xff]
      %v309 = vld [vmem:[%s3 + $0x8] sm:$0xff]
      %v310 = vld [vmem:[%s2] sm:$0xff]
      %v311 = vld [vmem:[%s2 + $0x8] sm:$0xff]
      %v312 = vld [vmem:[%s4] sm:$0xff]
      %v313 = vld [vmem:[%s5] sm:$0xff]
      %v314 = vld [vmem:[%s6] sm:$0xff]
      %v315 = vld [vmem:[%s300] sm:$0xff]
      %v316 = vld [vmem:[%s300 + $0x8] sm:$0xff]
      %318 = vset.pattern.permute.xlu0 0
      %319 = vperm.xlu0 %318, %v313
      %v320 = vpop.permute.xlu0 %319
      %v322 = vmul.f32 %v315, %v320
      %v323 = vmul.f32 %v316, %v320
      %325 = vset.pattern.permute.xlu0 0
      %326 = vperm.xlu0 %325, %v314
      %v327 = vpop.permute.xlu0 %326
      %v329 = vadd.f32 %v322, %v327
      %v330 = vadd.f32 %v323, %v327
      %v331 = vmax.f32 %v329, 0.0
      %v332 = vmax.f32 %v330, 0.0
      %334 = vset.pattern.permute.xlu0 0
      %335 = vperm.xlu0 %334, %v310
      %v336 = vpop.permute.xlu0 %335
      %339 = vset.pattern.permute.xlu0 0
      %340 = vperm.xlu0 %339, %v311
      %v341 = vpop.permute.xlu0 %340
      %vm343 = vcmask 64512
      %v345 = vsel %vm343, %v306, 0
      %v348 = vsel %vm343, %v307, 0
      %350 = vmatprep.subr.mxu0 0.0
      %351 = vmatpush1.msra.mxu0 0.0
      %352 = vmatprep.subr.mxu0 0.0
      %353 = vmatpush1.msra.mxu0 0.0
      %354 = vmatprep.subr.mxu0 0.0
      %355 = vmatpush1.msra.mxu0 0.0
      %356 = vmatprep.subr.mxu0 0.0
      %357 = vmatpush1.msra.mxu0 0.0
      %358 = vmatprep.subr.mxu0 0.0
      %359 = vmatpush1.msra.mxu0 0.0
      %360 = vmatprep.subr.mxu0 0.0
      %361 = vmatpush1.msra.mxu0 0.0
      %362 = vmatprep.subr.mxu0 0.0
      %363 = vmatpush1.msra.mxu0 0.0
      %364 = vmatprep.subr.mxu0 0.0
      %365 = vmatpush1.msra.mxu0 0.0
      %366 = vmatprep.subr.mxu0 0.0
      %367 = vmatpush1.msra.mxu0 0.0
      %368 = vmatprep.subr.mxu0 0.0
      %369 = vmatpush1.msra.mxu0 0.0
      %370 = vmatprep.subr.mxu0 0.0
      %371 = vmatpush1.msra.mxu0 0.0
      %372 = vmatprep.subr.mxu0 0.0
      %373 = vmatpush1.msra.mxu0 0.0
      %374 = vmatprep.subr.mxu0 0.0
      %375 = vmatpush1.msra.mxu0 0.0
      %376 = vmatprep.subr.mxu0 0.0
      %377 = vmatpush1.msra.mxu0 0.0
      %378 = vmatprep.subr.mxu0 0.0
      %379 = vmatpush1.msra.mxu0 0.0
      %380 = vmatprep.subr.mxu0 %v332
      %381 = vmatpush1.msra.mxu0 %v331
      %382 = vmatprep.subr.mxu0 0.0
      %383 = vmatpush2.msra.mxu0 0.0
      %384 = vmatprep.subr.mxu0 0.0
      %385 = vmatpush2.msra.mxu0 0.0
      %386 = vmatprep.subr.mxu0 0.0
      %387 = vmatpush2.msra.mxu0 0.0
      %388 = vmatprep.subr.mxu0 0.0
      %389 = vmatpush2.msra.mxu0 0.0
      %390 = vmatprep.subr.mxu0 0.0
      %391 = vmatpush2.msra.mxu0 0.0
      %392 = vmatprep.subr.mxu0 0.0
      %393 = vmatpush2.msra.mxu0 0.0
      %394 = vmatprep.subr.mxu0 0.0
      %395 = vmatpush2.msra.mxu0 0.0
      %396 = vmatprep.subr.mxu0 0.0
      %397 = vmatpush2.msra.mxu0 0.0
      %398 = vmatprep.subr.mxu0 0.0
      %399 = vmatpush2.msra.mxu0 0.0
      %400 = vmatprep.subr.mxu0 0.0
      %401 = vmatpush2.msra.mxu0 0.0
      %402 = vmatprep.subr.mxu0 0.0
      %403 = vmatpush2.msra.mxu0 0.0
      %404 = vmatprep.subr.mxu0 0.0
      %405 = vmatpush2.msra.mxu0 0.0
      %406 = vmatprep.subr.mxu0 0.0
      %407 = vmatpush2.msra.mxu0 0.0
      %408 = vmatprep.subr.mxu0 0.0
      %409 = vmatpush2.msra.mxu0 0.0
      %410 = vmatprep.subr.mxu0 0.0
      %411 = vmatpush2.msra.mxu0 0.0
      %412 = vmatprep.subr.mxu0 0.0
      %413 = vmatpush2.msra.mxu0 0.0
      %414 = vmatprep.mubr.f32.mxu0 0.0
      %415 = vmatmul.mubr.f32.gmra.mxu0 %v345
      %v416 = vpop.f32.mrf.mxu0
      %v417 = vadd.f32 %v336, %v416
      %v418 = vpop.f32.mrf.mxu0
      %v419 = vadd.f32 %v336, %v418
      %420 = vmatprep.mubr.f32.mxu0 0.0
      %421 = vmatmul.mubr.f32.gmra.mxu0 %v348
      %v422 = vpop.f32.mrf.mxu0
      %v423 = vadd.f32 %v341, %v422
      %v424 = vpop.f32.mrf.mxu0
      %v425 = vadd.f32 %v341, %v424
      %426 = vdwg.mxu0
      %v427 = vmax.f32 %v417, 0.0
      %v428 = vmax.f32 %v419, 0.0
      %v429 = vmax.f32 %v423, 0.0
      %v430 = vmax.f32 %v425, 0.0
      %431 = vrot.lane.b32.xlu0 %v427, 17
      %v432 = vpop.permute.xlu0 %431
      %433 = vrot.lane.b32.xlu0 %v429, 17
      %v434 = vpop.permute.xlu0 %433
      %435 = vrot.lane.b32.xlu0 %v428, 17
      %v436 = vpop.permute.xlu0 %435
      %437 = vrot.lane.b32.xlu0 %v430, 17
      %v438 = vpop.permute.xlu0 %437
      %v439 = vlaneseq
      %v440 = vand.u32 %v439, 127
      %vm441 = vcmp.lt.s32.totalorder %v440, 17
      %v442 = vsel %vm441, %v432, %v436
      %v443 = vsel %vm441, %v434, %v438
      %v444 = vsel %vm441, %v436, %v432
      %v445 = vsel %vm441, %v438, %v434
      %v446 = vld [vmem:[%s7] ss:$8 sm:$0x3]
      %v448 = vlaneseq
      %v449 = vshrl.u32 %v448, 7
      %v450 = vsub.s32 0, %v449
      %v451 = vrot.slane %v446, %v450
      %v452 = vlaneseq
      %v453 = vshrl.u32 %v452, 7
      %v454 = vsub.s32 1, %v453
      %v455 = vrot.slane %v446, %v454
      %v458 = vmul.f32 %v444, %v451
      %v459 = vmul.f32 %v442, %v455
      %v460 = vmul.f32 %v445, %v451
      %v461 = vmul.f32 %v443, %v455
      %462 = vst [vmem:[#allocation2] sm:$0xff] %v458
      %463 = vst [vmem:[#allocation2 + $0x8] sm:$0xff] %v459
      %464 = vst [vmem:[#allocation2 + $0x10] sm:$0xff] %v460
      %465 = vst [vmem:[#allocation2 + $0x18] sm:$0xff] %v461
      %466 = vrot.lane.b32.xlu0 %v427, 16
      %v467 = vpop.permute.xlu0 %466
      %468 = vrot.lane.b32.xlu0 %v429, 16
      %v469 = vpop.permute.xlu0 %468
      %470 = vrot.lane.b32.xlu0 %v428, 16
      %v471 = vpop.permute.xlu0 %470
      %472 = vrot.lane.b32.xlu0 %v430, 16
      %v473 = vpop.permute.xlu0 %472
      %vm474 = vcmp.lt.s32.totalorder %v440, 16
      %v475 = vsel %vm474, %v467, %v471
      %v476 = vsel %vm474, %v469, %v473
      %v477 = vsel %vm474, %v471, %v467
      %v478 = vsel %vm474, %v473, %v469
      %s479 = scalar_lea.vmem %s7, 1
      %v480 = vld [vmem:[%s479] ss:$8 sm:$0x3]
      %v482 = vlaneseq
      %v483 = vshrl.u32 %v482, 7
      %v484 = vsub.s32 0, %v483
      %v485 = vrot.slane %v480, %v484
      %v486 = vlaneseq
      %v487 = vshrl.u32 %v486, 7
      %v488 = vsub.s32 1, %v487
      %v489 = vrot.slane %v480, %v488
      %v492 = vmul.f32 %v477, %v485
      %v493 = vmul.f32 %v475, %v489
      %v494 = vmul.f32 %v478, %v485
      %v495 = vmul.f32 %v476, %v489
      %496 = vst [vmem:[#allocation2 + $0x20] sm:$0xff] %v492
      %497 = vst [vmem:[#allocation2 + $0x28] sm:$0xff] %v493
      %498 = vst [vmem:[#allocation2 + $0x30] sm:$0xff] %v494
      %499 = vst [vmem:[#allocation2 + $0x38] sm:$0xff] %v495
      %500 = vrot.lane.b32.xlu0 %v427, 15
      %v501 = vpop.permute.xlu0 %500
      %502 = vrot.lane.b32.xlu0 %v429, 15
      %v503 = vpop.permute.xlu0 %502
      %504 = vrot.lane.b32.xlu0 %v428, 15
      %v505 = vpop.permute.xlu0 %504
      %506 = vrot.lane.b32.xlu0 %v430, 15
      %v507 = vpop.permute.xlu0 %506
      %vm508 = vcmp.lt.s32.totalorder %v440, 15
      %v509 = vsel %vm508, %v501, %v505
      %v510 = vsel %vm508, %v503, %v507
      %v511 = vsel %vm508, %v505, %v501
      %v512 = vsel %vm508, %v507, %v503
      %s513 = scalar_lea.vmem %s7, 2
      %v514 = vld [vmem:[%s513] ss:$8 sm:$0x3]
      %v516 = vlaneseq
      %v517 = vshrl.u32 %v516, 7
      %v518 = vsub.s32 0, %v517
      %v519 = vrot.slane %v514, %v518
      %v520 = vlaneseq
      %v521 = vshrl.u32 %v520, 7
      %v522 = vsub.s32 1, %v521
      %v523 = vrot.slane %v514, %v522
      %v526 = vmul.f32 %v511, %v519
      %v527 = vmul.f32 %v509, %v523
      %v528 = vmul.f32 %v512, %v519
      %v529 = vmul.f32 %v510, %v523
      %530 = vst [vmem:[#allocation2 + $0x40] sm:$0xff] %v526
      %531 = vst [vmem:[#allocation2 + $0x48] sm:$0xff] %v527
      %532 = vst [vmem:[#allocation2 + $0x50] sm:$0xff] %v528
      %533 = vst [vmem:[#allocation2 + $0x58] sm:$0xff] %v529
      %534 = vrot.lane.b32.xlu0 %v427, 1
      %v535 = vpop.permute.xlu0 %534
      %536 = vrot.lane.b32.xlu0 %v429, 1
      %v537 = vpop.permute.xlu0 %536
      %538 = vrot.lane.b32.xlu0 %v428, 1
      %v539 = vpop.permute.xlu0 %538
      %540 = vrot.lane.b32.xlu0 %v430, 1
      %v541 = vpop.permute.xlu0 %540
      %vm542 = vcmp.lt.s32.totalorder %v440, 1
      %v543 = vsel %vm542, %v535, %v539
      %v544 = vsel %vm542, %v537, %v541
      %v545 = vsel %vm542, %v539, %v535
      %v546 = vsel %vm542, %v541, %v537
      %s547 = scalar_lea.vmem %s7, 3
      %v548 = vld [vmem:[%s547] ss:$8 sm:$0x3]
      %v550 = vlaneseq
      %v551 = vshrl.u32 %v550, 7
      %v552 = vsub.s32 0, %v551
      %v553 = vrot.slane %v548, %v552
      %v554 = vlaneseq
      %v555 = vshrl.u32 %v554, 7
      %v556 = vsub.s32 1, %v555
      %v557 = vrot.slane %v548, %v556
      %v560 = vmul.f32 %v545, %v553
      %v561 = vmul.f32 %v543, %v557
      %v562 = vmul.f32 %v546, %v553
      %v563 = vmul.f32 %v544, %v557
      %564 = vst [vmem:[#allocation2 + $0x60] sm:$0xff] %v560
      %565 = vst [vmem:[#allocation2 + $0x68] sm:$0xff] %v561
      %566 = vst [vmem:[#allocation2 + $0x70] sm:$0xff] %v562
      %567 = vst [vmem:[#allocation2 + $0x78] sm:$0xff] %v563
      %568 = vst [vmem:[#allocation2 + $0x80] sm:$0xff] %v427
      %569 = vst [vmem:[#allocation2 + $0x88] sm:$0xff] %v428
      %570 = vst [vmem:[#allocation2 + $0x90] sm:$0xff] %v429
      %571 = vst [vmem:[#allocation2 + $0x98] sm:$0xff] %v430
      %572 = vrot.lane.b32.xlu0 %v427, 127
      %v573 = vpop.permute.xlu0 %572
      %574 = vrot.lane.b32.xlu0 %v429, 127
      %v575 = vpop.permute.xlu0 %574
      %576 = vrot.lane.b32.xlu0 %v428, 127
      %v577 = vpop.permute.xlu0 %576
      %578 = vrot.lane.b32.xlu0 %v430, 127
      %v579 = vpop.permute.xlu0 %578
      %vm580 = vcmp.lt.s32.totalorder %v440, 127
      %v581 = vsel %vm580, %v573, %v577
      %v582 = vsel %vm580, %v575, %v579
      %v583 = vsel %vm580, %v577, %v573
      %v584 = vsel %vm580, %v579, %v575
      %s585 = scalar_lea.vmem %s7, 5
      %v586 = vld [vmem:[%s585] ss:$8 sm:$0x3]
      %v588 = vlaneseq
      %v589 = vshrl.u32 %v588, 7
      %v590 = vsub.s32 0, %v589
      %v591 = vrot.slane %v586, %v590
      %v592 = vlaneseq
      %v593 = vshrl.u32 %v592, 7
      %v594 = vsub.s32 1, %v593
      %v595 = vrot.slane %v586, %v594
      %v598 = vmul.f32 %v581, %v591
      %v599 = vmul.f32 %v583, %v595
      %v600 = vmul.f32 %v582, %v591
      %v601 = vmul.f32 %v584, %v595
      %602 = vst [vmem:[#allocation2 + $0xa0] sm:$0xff] %v598
      %603 = vst [vmem:[#allocation2 + $0xa8] sm:$0xff] %v599
      %604 = vst [vmem:[#allocation2 + $0xb0] sm:$0xff] %v600
      %605 = vst [vmem:[#allocation2 + $0xb8] sm:$0xff] %v601
      %606 = vrot.lane.b32.xlu0 %v427, 113
      %v607 = vpop.permute.xlu0 %606
      %608 = vrot.lane.b32.xlu0 %v429, 113
      %v609 = vpop.permute.xlu0 %608
      %610 = vrot.lane.b32.xlu0 %v428, 113
      %v611 = vpop.permute.xlu0 %610
      %612 = vrot.lane.b32.xlu0 %v430, 113
      %v613 = vpop.permute.xlu0 %612
      %vm614 = vcmp.lt.s32.totalorder %v440, 113
      %v615 = vsel %vm614, %v607, %v611
      %v616 = vsel %vm614, %v609, %v613
      %v617 = vsel %vm614, %v611, %v607
      %v618 = vsel %vm614, %v613, %v609
      %s619 = scalar_lea.vmem %s7, 6
      %v620 = vld [vmem:[%s619] ss:$8 sm:$0x3]
      %v622 = vlaneseq
      %v623 = vshrl.u32 %v622, 7
      %v624 = vsub.s32 0, %v623
      %v625 = vrot.slane %v620, %v624
      %v626 = vlaneseq
      %v627 = vshrl.u32 %v626, 7
      %v628 = vsub.s32 1, %v627
      %v629 = vrot.slane %v620, %v628
      %v632 = vmul.f32 %v615, %v625
      %v633 = vmul.f32 %v617, %v629
      %v634 = vmul.f32 %v616, %v625
      %v635 = vmul.f32 %v618, %v629
      %636 = vst [vmem:[#allocation2 + $0xc0] sm:$0xff] %v632
      %637 = vst [vmem:[#allocation2 + $0xc8] sm:$0xff] %v633
      %638 = vst [vmem:[#allocation2 + $0xd0] sm:$0xff] %v634
      %639 = vst [vmem:[#allocation2 + $0xd8] sm:$0xff] %v635
      %640 = vrot.lane.b32.xlu0 %v427, 112
      %v641 = vpop.permute.xlu0 %640
      %642 = vrot.lane.b32.xlu0 %v429, 112
      %v643 = vpop.permute.xlu0 %642
      %644 = vrot.lane.b32.xlu0 %v428, 112
      %v645 = vpop.permute.xlu0 %644
      %646 = vrot.lane.b32.xlu0 %v430, 112
      %v647 = vpop.permute.xlu0 %646
      %vm648 = vcmp.lt.s32.totalorder %v440, 112
      %v649 = vsel %vm648, %v641, %v645
      %v650 = vsel %vm648, %v643, %v647
      %v651 = vsel %vm648, %v645, %v641
      %v652 = vsel %vm648, %v647, %v643
      %s653 = scalar_lea.vmem %s7, 7
      %v654 = vld [vmem:[%s653] ss:$8 sm:$0x3]
      %v656 = vlaneseq
      %v657 = vshrl.u32 %v656, 7
      %v658 = vsub.s32 0, %v657
      %v659 = vrot.slane %v654, %v658
      %v660 = vlaneseq
      %v661 = vshrl.u32 %v660, 7
      %v662 = vsub.s32 1, %v661
      %v663 = vrot.slane %v654, %v662
      %v666 = vmul.f32 %v649, %v659
      %v667 = vmul.f32 %v651, %v663
      %v668 = vmul.f32 %v650, %v659
      %v669 = vmul.f32 %v652, %v663
      %670 = vst [vmem:[#allocation2 + $0xe0] sm:$0xff] %v666
      %671 = vst [vmem:[#allocation2 + $0xe8] sm:$0xff] %v667
      %672 = vst [vmem:[#allocation2 + $0xf0] sm:$0xff] %v668
      %673 = vst [vmem:[#allocation2 + $0xf8] sm:$0xff] %v669
      %674 = vrot.lane.b32.xlu0 %v427, 111
      %v675 = vpop.permute.xlu0 %674
      %676 = vrot.lane.b32.xlu0 %v429, 111
      %v677 = vpop.permute.xlu0 %676
      %678 = vrot.lane.b32.xlu0 %v428, 111
      %v679 = vpop.permute.xlu0 %678
      %680 = vrot.lane.b32.xlu0 %v430, 111
      %v681 = vpop.permute.xlu0 %680
      %vm682 = vcmp.lt.s32.totalorder %v440, 111
      %v683 = vsel %vm682, %v675, %v679
      %v684 = vsel %vm682, %v677, %v681
      %v685 = vsel %vm682, %v679, %v675
      %v686 = vsel %vm682, %v681, %v677
      %s687 = scalar_lea.vmem %s7, 16
      %v688 = vld [vmem:[%s687] ss:$8 sm:$0x3]
      %v690 = vlaneseq
      %v691 = vshrl.u32 %v690, 7
      %v692 = vsub.s32 0, %v691
      %v693 = vrot.slane %v688, %v692
      %v694 = vlaneseq
      %v695 = vshrl.u32 %v694, 7
      %v696 = vsub.s32 1, %v695
      %v697 = vrot.slane %v688, %v696
      %v700 = vmul.f32 %v683, %v693
      %v701 = vmul.f32 %v685, %v697
      %v702 = vmul.f32 %v684, %v693
      %v703 = vmul.f32 %v686, %v697
      %704 = vst [vmem:[#allocation2 + $0x100] sm:$0xff] %v700
      %705 = vst [vmem:[#allocation2 + $0x108] sm:$0xff] %v701
      %706 = vst [vmem:[#allocation2 + $0x110] sm:$0xff] %v702
      %707 = vst [vmem:[#allocation2 + $0x118] sm:$0xff] %v703
      %v708 = vld [vmem:[#allocation2] sm:$0xff]
      %v709 = vld [vmem:[#allocation2 + $0x8] sm:$0xff]
      %v710 = vld [vmem:[#allocation2 + $0x10] sm:$0xff]
      %v711 = vld [vmem:[#allocation2 + $0x18] sm:$0xff]
      %v712 = vld [vmem:[#allocation2 + $0x20] sm:$0xff]
      %v713 = vld [vmem:[#allocation2 + $0x28] sm:$0xff]
      %v714 = vld [vmem:[#allocation2 + $0x30] sm:$0xff]
      %v715 = vld [vmem:[#allocation2 + $0x38] sm:$0xff]
      %v716 = vld [vmem:[#allocation2 + $0x40] sm:$0xff]
      %v717 = vld [vmem:[#allocation2 + $0x48] sm:$0xff]
      %v718 = vld [vmem:[#allocation2 + $0x50] sm:$0xff]
      %v719 = vld [vmem:[#allocation2 + $0x58] sm:$0xff]
      %v720 = vld [vmem:[#allocation2 + $0x60] sm:$0xff]
      %v721 = vld [vmem:[#allocation2 + $0x68] sm:$0xff]
      %v722 = vld [vmem:[#allocation2 + $0x70] sm:$0xff]
      %v723 = vld [vmem:[#allocation2 + $0x78] sm:$0xff]
      %v724 = vld [vmem:[#allocation2 + $0x80] sm:$0xff]
      %v725 = vld [vmem:[#allocation2 + $0x88] sm:$0xff]
      %v726 = vld [vmem:[#allocation2 + $0x90] sm:$0xff]
      %v727 = vld [vmem:[#allocation2 + $0x98] sm:$0xff]
      %v728 = vld [vmem:[#allocation2 + $0xa0] sm:$0xff]
      %v729 = vld [vmem:[#allocation2 + $0xa8] sm:$0xff]
      %v730 = vld [vmem:[#allocation2 + $0xb0] sm:$0xff]
      %v731 = vld [vmem:[#allocation2 + $0xb8] sm:$0xff]
      %v732 = vld [vmem:[#allocation2 + $0xc0] sm:$0xff]
      %v733 = vld [vmem:[#allocation2 + $0xc8] sm:$0xff]
      %v734 = vld [vmem:[#allocation2 + $0xd0] sm:$0xff]
      %v735 = vld [vmem:[#allocation2 + $0xd8] sm:$0xff]
      %v736 = vld [vmem:[#allocation2 + $0xe0] sm:$0xff]
      %v737 = vld [vmem:[#allocation2 + $0xe8] sm:$0xff]
      %v738 = vld [vmem:[#allocation2 + $0xf0] sm:$0xff]
      %v739 = vld [vmem:[#allocation2 + $0xf8] sm:$0xff]
      %v740 = vld [vmem:[#allocation2 + $0x100] sm:$0xff]
      %v741 = vld [vmem:[#allocation2 + $0x108] sm:$0xff]
      %v742 = vld [vmem:[#allocation2 + $0x110] sm:$0xff]
      %v743 = vld [vmem:[#allocation2 + $0x118] sm:$0xff]
      %745 = vset.pattern.permute.xlu0 0
      %746 = vperm.xlu0 %745, %v312
      %v747 = vpop.permute.xlu0 %746
      %vm749 = vcmask 130048
      %v751 = vsel %vm749, %v309, 0
      %753 = vmatprep.subr.mxu0 %v739
      %754 = vmatpush1.msra.mxu0 %v738
      %755 = vmatprep.subr.mxu0 %v737
      %756 = vmatpush1.msra.mxu0 %v736
      %757 = vmatprep.subr.mxu0 %v735
      %758 = vmatpush1.msra.mxu0 %v734
      %759 = vmatprep.subr.mxu0 %v733
      %760 = vmatpush1.msra.mxu0 %v732
      %761 = vmatprep.subr.mxu0 %v731
      %762 = vmatpush1.msra.mxu0 %v730
      %763 = vmatprep.subr.mxu0 %v729
      %764 = vmatpush1.msra.mxu0 %v728
      %765 = vmatprep.subr.mxu0 %v727
      %766 = vmatpush1.msra.mxu0 %v726
      %767 = vmatprep.subr.mxu0 %v725
      %768 = vmatpush1.msra.mxu0 %v724
      %769 = vmatprep.subr.mxu0 %v723
      %770 = vmatpush1.msra.mxu0 %v722
      %771 = vmatprep.subr.mxu0 %v721
      %772 = vmatpush1.msra.mxu0 %v720
      %773 = vmatprep.subr.mxu0 %v719
      %774 = vmatpush1.msra.mxu0 %v718
      %775 = vmatprep.subr.mxu0 %v717
      %776 = vmatpush1.msra.mxu0 %v716
      %777 = vmatprep.subr.mxu0 %v715
      %778 = vmatpush1.msra.mxu0 %v714
      %779 = vmatprep.subr.mxu0 %v713
      %780 = vmatpush1.msra.mxu0 %v712
      %781 = vmatprep.subr.mxu0 %v711
      %782 = vmatpush1.msra.mxu0 %v710
      %783 = vmatprep.subr.mxu0 %v709
      %784 = vmatpush1.msra.mxu0 %v708
      %785 = vmatprep.subr.mxu0 0.0
      %786 = vmatpush2.msra.mxu0 0.0
      %787 = vmatprep.subr.mxu0 0.0
      %788 = vmatpush2.msra.mxu0 0.0
      %789 = vmatprep.subr.mxu0 0.0
      %790 = vmatpush2.msra.mxu0 0.0
      %791 = vmatprep.subr.mxu0 0.0
      %792 = vmatpush2.msra.mxu0 0.0
      %793 = vmatprep.subr.mxu0 0.0
      %794 = vmatpush2.msra.mxu0 0.0
      %795 = vmatprep.subr.mxu0 0.0
      %796 = vmatpush2.msra.mxu0 0.0
      %797 = vmatprep.subr.mxu0 0.0
      %798 = vmatpush2.msra.mxu0 0.0
      %799 = vmatprep.subr.mxu0 0.0
      %800 = vmatpush2.msra.mxu0 0.0
      %801 = vmatprep.subr.mxu0 0.0
      %802 = vmatpush2.msra.mxu0 0.0
      %803 = vmatprep.subr.mxu0 0.0
      %804 = vmatpush2.msra.mxu0 0.0
      %805 = vmatprep.subr.mxu0 0.0
      %806 = vmatpush2.msra.mxu0 0.0
      %807 = vmatprep.subr.mxu0 0.0
      %808 = vmatpush2.msra.mxu0 0.0
      %809 = vmatprep.subr.mxu0 0.0
      %810 = vmatpush2.msra.mxu0 0.0
      %811 = vmatprep.subr.mxu0 0.0
      %812 = vmatpush2.msra.mxu0 0.0
      %813 = vmatprep.subr.mxu0 %v743
      %814 = vmatpush2.msra.mxu0 %v742
      %815 = vmatprep.subr.mxu0 %v741
      %816 = vmatpush2.msra.mxu0 %v740
      %817 = vmatprep.mubr.f32.mxu0 %v751
      %818 = vmatmul.mubr.f32.gmra.mxu0 %v308
      %v819 = vpop.f32.mrf.mxu0
      %v820 = vadd.f32 %v747, %v819
      %v821 = vpop.f32.mrf.mxu0
      %v822 = vadd.f32 %v747, %v821
      %823 = vdwg.mxu0
      %824 = vst [vmem:[%s305] sm:$0xff] %v820
      %825 = vst [vmem:[%s305 + $0x8] sm:$0xff] %v822
      %826 = vst [vmem:[%s305 + $0x10] sm:$0xff] %v315
      %827 = vst [vmem:[%s305 + $0x18] sm:$0xff] %v316
      %p828 = scmp.lt.s32.totalorder %s19, 1
      %s829 = scalar_select %p828, %s19, 1
      %s830 = smul.addr %s829, 4
      %s831 = smul.addr %s830, 8
      %s832 = scalar_lea.vmem %s8, %s831
      // Predicated region
      $region53: #{dense_layer_forward.1} parent=51 // pred_check
        %p833 = pneg %p210
      $region54: #{dense_layer_forward.1} parent=51 // pred_check_branch
        %835 = sbr.rel (%p833) target = $region56
      $region55: #{dense_layer_forward.1} parent=51 // pred_region
        _
      $region56: #{dense_layer_forward.1} parent=51 // pred_fallthru
        _
    $region52: #{dense_layer_forward.1} parent=5 // pred_fallthru
      _
    %p836 = scmp.le.s32.totalorder 2, %s14
    // Predicated region
    $region57: #{dense_layer_forward.1} parent=5 // pred_check
      %p837 = pneg %p836
    $region58: #{dense_layer_forward.1} parent=5 // pred_check_branch
      %839 = sbr.rel (%p837) target = $region60
    $region59: #{dense_layer_forward.1} parent=5 // pred_region
      %s840 = ssub.s32 %s14, 2
      // Predicated region
      $region61: #{dense_layer_forward.1} parent=59 // pred_check
        %p841 = pneg %p216
      $region62: #{dense_layer_forward.1} parent=59 // pred_check_branch
        %843 = sbr.rel (%p841) target = $region64
      $region63: #{dense_layer_forward.1} parent=59 // pred_region
        %p844 = scmp.lt.s32.totalorder %s20, 1
        %s845 = scalar_select %p844, %s20, 1
        %s846 = smul.addr %s845, 4
        %s847 = smul.addr %s846, 8
        %s848 = scalar_lea.vmem %s8, %s847
      $region64: #{dense_layer_forward.1} parent=59 // pred_fallthru
        _
    $region60: #{dense_layer_forward.1} parent=5 // pred_fallthru
      _
  $region6: #{dense_layer_forward.1} parent=0 // loop_footer
    %s18 = sadd.s32 1, %s14
  $region7: #{dense_layer_forward.1} parent=0 // loop_footer_branch
    %13 = sbr.rel target = $region3
  $region8: #{dense_layer_forward.1} parent=0 // loop_exit
    _

</llo_original>
